<compile_context>
chip_gen: v7x
topology: tpu7x:2x2x1
jax: 0.10.0
libtpu: 0.0.40
codegen_flags: <defaults>
</compile_context>

<pallas_src>
import functools

import jax
import jax.numpy as jnp
from jax.experimental import pallas as pl
from jax.experimental.pallas import tpu as pltpu


def autopad(k, p=None):
    if p is None:
        p = k // 2 if isinstance(k, int) else [x // 2 for x in k]
    return p


def _round_up(x, m):
    return ((x + m - 1) // m) * m


# ----------------------------------------------------------------------------
# Pallas kernel: fused im2col + single (W_folded @ patches) matmul + BN bias
# + SiLU, channel-major layout.
# ----------------------------------------------------------------------------
def _conv_bn_silu_kernel(x_ref, w_ref, b_ref, o_ref, stack_ref, *,
                         k, C1p, Wp, row_tiles):
    # x_ref:     (C1p, Lpad)     f32  padded image, spatial flattened on lanes
    # w_ref:     (c2p, KK)       f32  conv weight with BN scale folded, KK=k*k*C1p
    # b_ref:     (c2p, 1)        f32  folded BN bias
    # o_ref:     (c2p, Ho*Wp)         output (channel-major, W still padded)
    # stack_ref: (KK, max_tl)    f32  im2col slab (written once, read once per dot)
    w = w_ref[...]
    b = b_ref[...]
    for (r0, th) in row_tiles:              # static Python loop, ragged last tile ok
        tl = th * Wp
        # Build the im2col slab: one contiguous static lane-window slice per
        # filter tap, stored into a sublane-aligned row block of the scratch.
        for kh in range(k):
            for kw in range(k):
                t = kh * k + kw
                src = (r0 + kh) * Wp + kw
                stack_ref[pl.ds(t * C1p, C1p), pl.ds(0, tl)] = \
                    x_ref[:, pl.ds(src, tl)]
        # One MXU matmul over the whole (kh, kw, c) contraction; bias and SiLU
        # applied on the result value (no accumulator scratch round trips).
        y = jnp.dot(w, stack_ref[:, pl.ds(0, tl)],
                    preferred_element_type=jnp.float32)
        y = y + b
        # numerically-stable SiLU: sigmoid via exp(-|y|) + EUP approx reciprocal
        z = jnp.exp(-jnp.abs(y))
        r = pl.reciprocal(1.0 + z, approx=True)
        sig = jnp.where(y >= 0, r, 1.0 - r)
        o_ref[:, pl.ds(r0 * Wp, tl)] = (y * sig).astype(o_ref.dtype)


# ----------------------------------------------------------------------------
# Wrapper: layout/pad glue + BN folding + pallas_call
# ----------------------------------------------------------------------------
@functools.partial(jax.jit, static_argnames=("k", "s", "p"))
def conv_bn_silu(x_nchw, weight, bn_gamma, bn_beta, bn_mean, bn_var,
                 k, s, p, eps=1e-5):
    """Equivalent of Conv.forward: SiLU(BN(Conv2d(x))). Input/output NCHW."""
    if s != 1:
        # TODO(synk): stride > 1 needs strided lane gathers in this layout.
        raise NotImplementedError("conv_bn_silu Pallas kernel supports s=1 only")

    N, c1, H, W = x_nchw.shape
    c2 = weight.shape[0]
    Ho = H + 2 * p - k + 1
    Wo = W + 2 * p - k + 1
    Hp, Wp = H + 2 * p, W + 2 * p
    C1p = _round_up(c1, 8)       # input channels -> sublane multiple
    c2p = _round_up(c2, 8)       # output channels -> sublane multiple (no 128 pad!)
    KK = k * k * C1p             # folded contraction: taps x channels
    out_dtype = x_nchw.dtype

    # --- glue (plain JAX): one pad (channels, spatial halo, plus a few extra
    #     zero rows so the last row tile's tap windows never read OOB), then a
    #     free reshape that flattens spatial onto the lane axis ---
    extra_rows = -(-(k - 1) // Wp)           # ceil((k-1)/Wp); 0 when k == 1
    xp = jnp.pad(x_nchw.astype(jnp.float32),
                 ((0, 0), (0, C1p - c1), (p, p + extra_rows), (p, p)))
    Lpad = (Hp + extra_rows) * Wp
    xp = xp.reshape(N, C1p, Lpad)

    # --- BN folding into the weight / bias ---
    scale = bn_gamma * jax.lax.rsqrt(bn_var + eps)              # (c2,)
    bias = bn_beta - bn_mean * scale                            # (c2,)
    # (c2, c1, kh, kw) -> (c2, kh, kw, c1) ; fold BN scale per output channel;
    # pad c1 -> C1p inside each tap block, c2 -> c2p; flatten to (c2p, KK).
    w = jnp.transpose(weight, (0, 2, 3, 1)) * scale[:, None, None, None]
    w = jnp.pad(w, ((0, c2p - c2), (0, 0), (0, 0), (0, C1p - c1)))
    w = w.reshape(c2p, KK).astype(jnp.float32)
    b = jnp.pad(bias, (0, c2p - c2)).reshape(c2p, 1).astype(jnp.float32)

    # --- row tiling: target >= ~2048 output pixels per matmul, bound the
    #     im2col scratch; last tile may be ragged (static in-kernel loop) ---
    stack_budget = 6 << 20
    th_cap = max(1, stack_budget // (KK * Wp * 4))
    th_target = max(1, -(-2048 // Wp))
    th = max(1, min(Ho, th_target, th_cap))
    row_tiles = tuple((r0, min(th, Ho - r0)) for r0 in range(0, Ho, th))
    max_tl = row_tiles[0][1] * Wp

    # --- explicit VMEM budget (lane-padded), capped by physical VMEM ---
    def lane_bytes(n, itemsize=4):
        return _round_up(max(n, 128), 128) * itemsize
    img_b = C1p * lane_bytes(Lpad)
    w_b = c2p * lane_bytes(KK)
    b_b = c2p * lane_bytes(1)
    out_b = c2p * lane_bytes(Ho * Wp, jnp.dtype(out_dtype).itemsize)
    stk_b = KK * lane_bytes(max_tl)
    need = 2 * (img_b + w_b + b_b + out_b) + stk_b + (2 << 20)
    try:
        cap = int(0.6 * pltpu.get_tpu_info().vmem_capacity_bytes)
    except Exception:
        cap = 40 << 20
    vmem_limit = int(min(max(need, 8 << 20), cap))

    out = pl.pallas_call(
        functools.partial(_conv_bn_silu_kernel,
                          k=k, C1p=C1p, Wp=Wp, row_tiles=row_tiles),
        out_shape=jax.ShapeDtypeStruct((N, c2p, Ho * Wp), out_dtype),
        grid_spec=pltpu.PrefetchScalarGridSpec(
            num_scalar_prefetch=0,
            grid=(N,),
            in_specs=[
                pl.BlockSpec((None, C1p, Lpad), lambda n: (n, 0, 0)),
                pl.BlockSpec((c2p, KK), lambda n: (0, 0)),
                pl.BlockSpec((c2p, 1), lambda n: (0, 0)),
            ],
            out_specs=pl.BlockSpec((None, c2p, Ho * Wp), lambda n: (n, 0, 0)),
            scratch_shapes=[pltpu.VMEM((KK, max_tl), jnp.float32)],
        ),
        compiler_params=pltpu.CompilerParams(
            dimension_semantics=("parallel",),
            vmem_limit_bytes=vmem_limit),
    )(xp, w, b)

    # drop padded channels / padded W columns (small copy; stays NCHW)
    out = out.reshape(N, c2p, Ho, Wp)[:, :c2, :, :Wo]
    return out


# ----------------------------------------------------------------------------
# Reference (plain JAX, f32) for verification
# ----------------------------------------------------------------------------
def _reference(x_nchw, weight, g, b, m, v, k, s, p, eps=1e-5):
    y = jax.lax.conv_general_dilated(
        x_nchw, weight, window_strides=(s, s), padding=[(p, p), (p, p)],
        dimension_numbers=("NCHW", "OIHW", "NCHW"))
    scale = (g / jnp.sqrt(v + eps)).reshape(1, -1, 1, 1)
    bias = (b - m * g / jnp.sqrt(v + eps)).reshape(1, -1, 1, 1)
    y = y * scale + bias
    return y * jax.nn.sigmoid(y)


if __name__ == "__main__":
    # Module config: Conv(c1=4, c2=8, k=3, s=1) -> autopad gives p=1
    c1, c2, k, s = 4, 8, 3, 1
    p = autopad(k)
    N, H, W = 2, 16, 16

    key = jax.random.PRNGKey(0)
    kx, kw, kg, kb, km, kv = jax.random.split(key, 6)

    x = jax.random.normal(kx, (N, c1, H, W), dtype=jnp.float32)
    weight = jax.random.normal(kw, (c2, c1, k, k), dtype=jnp.float32) * 0.1
    bn_gamma = 1.0 + 0.1 * jax.random.normal(kg, (c2,), dtype=jnp.float32)
    bn_beta = 0.1 * jax.random.normal(kb, (c2,), dtype=jnp.float32)
    bn_mean = 0.1 * jax.random.normal(km, (c2,), dtype=jnp.float32)
    bn_var = jnp.abs(1.0 + 0.1 * jax.random.normal(kv, (c2,), dtype=jnp.float32))

    out = conv_bn_silu(x, weight, bn_gamma, bn_beta, bn_mean, bn_var, k, s, p)
    out = jax.block_until_ready(out)

    ref = _reference(x, weight, bn_gamma, bn_beta, bn_mean, bn_var, k, s, p)
    assert out.shape == (N, c2, H, W), out.shape
    # f32 MXU operands; the only approximation is the EUP approx reciprocal
    # inside the sigmoid, so the tolerance can be tight.
    err = float(jnp.max(jnp.abs(out - ref)))
    assert jnp.allclose(out, ref, atol=2e-2, rtol=2e-2), err

    print("KERNEL_OK")
</pallas_src>

<mosaic_0001>
module attributes {stable_mosaic.version = 11 : i64} {
  func.func @_conv_bn_silu_kernel(%arg0: i32, %arg1: memref<1x8x342xf32, #tpu.memory_space<vmem>>, %arg2: memref<8x72xf32, #tpu.memory_space<vmem>>, %arg3: memref<8x1xf32, #tpu.memory_space<vmem>>, %arg4: memref<1x8x288xf32, #tpu.memory_space<vmem>>, %arg5: memref<72x288xf32, #tpu.memory_space<vmem>>) attributes {dimension_semantics = [#tpu.dimension_semantics<parallel>], iteration_bounds = array<i64: 2>, scalar_prefetch = 0 : i64, scratch_operands = 1 : i64, tpu.core_type = #tpu.core_type<tc>, window_params = [{transform_indices = @transform_0, window_bounds = array<i64: 1, 8, 342>}, {pipeline_mode = #tpu.pipeline_mode<synchronous>, transform_indices = @transform_1, window_bounds = array<i64: 8, 72>}, {pipeline_mode = #tpu.pipeline_mode<synchronous>, transform_indices = @transform_2, window_bounds = array<i64: 8, 1>}, {transform_indices = @transform_3, window_bounds = array<i64: 1, 8, 288>}]} {
    %c0 = arith.constant 0 : index
    %c0_0 = arith.constant 0 : index
    %0 = vector.load %arg2[%c0, %c0_0] : memref<8x72xf32, #tpu.memory_space<vmem>>, vector<8x72xf32>
    %c0_1 = arith.constant 0 : index
    %c0_2 = arith.constant 0 : index
    %1 = vector.load %arg3[%c0_1, %c0_2] : memref<8x1xf32, #tpu.memory_space<vmem>>, vector<8x1xf32>
    %c0_3 = arith.constant 0 : index
    %c0_4 = arith.constant 0 : index
    %c0_5 = arith.constant 0 : index
    %2 = vector.load %arg1[%c0_3, %c0_4, %c0_5] : memref<1x8x342xf32, #tpu.memory_space<vmem>>, vector<1x8x288xf32>
    %3 = vector.shape_cast %2 : vector<1x8x288xf32> to vector<8x288xf32>
    %c0_6 = arith.constant 0 : index
    %c0_7 = arith.constant 0 : index
    %4 = vector.load %arg5[%c0_6, %c0_7] : memref<72x288xf32, #tpu.memory_space<vmem>>, vector<8x288xf32>
    tpu.vector_store %arg5[%c0_6, %c0_7], %3 {strides = array<i32>} : memref<72x288xf32, #tpu.memory_space<vmem>>, vector<8x288xf32>,
    %c0_8 = arith.constant 0 : index
    %c0_9 = arith.constant 0 : index
    %c1 = arith.constant 1 : index
    %5 = vector.load %arg1[%c0_8, %c0_9, %c1] : memref<1x8x342xf32, #tpu.memory_space<vmem>>, vector<1x8x288xf32>
    %6 = vector.shape_cast %5 : vector<1x8x288xf32> to vector<8x288xf32>
    %c8 = arith.constant 8 : index
    %c0_10 = arith.constant 0 : index
    %7 = vector.load %arg5[%c8, %c0_10] : memref<72x288xf32, #tpu.memory_space<vmem>>, vector<8x288xf32>
    tpu.vector_store %arg5[%c8, %c0_10], %6 {strides = array<i32>} : memref<72x288xf32, #tpu.memory_space<vmem>>, vector<8x288xf32>,
    %c0_11 = arith.constant 0 : index
    %c0_12 = arith.constant 0 : index
    %c2 = arith.constant 2 : index
    %8 = vector.load %arg1[%c0_11, %c0_12, %c2] : memref<1x8x342xf32, #tpu.memory_space<vmem>>, vector<1x8x288xf32>
    %9 = vector.shape_cast %8 : vector<1x8x288xf32> to vector<8x288xf32>
    %c16 = arith.constant 16 : index
    %c0_13 = arith.constant 0 : index
    %10 = vector.load %arg5[%c16, %c0_13] : memref<72x288xf32, #tpu.memory_space<vmem>>, vector<8x288xf32>
    tpu.vector_store %arg5[%c16, %c0_13], %9 {strides = array<i32>} : memref<72x288xf32, #tpu.memory_space<vmem>>, vector<8x288xf32>,
    %c0_14 = arith.constant 0 : index
    %c0_15 = arith.constant 0 : index
    %c18 = arith.constant 18 : index
    %11 = vector.load %arg1[%c0_14, %c0_15, %c18] : memref<1x8x342xf32, #tpu.memory_space<vmem>>, vector<1x8x288xf32>
    %12 = vector.shape_cast %11 : vector<1x8x288xf32> to vector<8x288xf32>
    %c24 = arith.constant 24 : index
    %c0_16 = arith.constant 0 : index
    %13 = vector.load %arg5[%c24, %c0_16] : memref<72x288xf32, #tpu.memory_space<vmem>>, vector<8x288xf32>
    tpu.vector_store %arg5[%c24, %c0_16], %12 {strides = array<i32>} : memref<72x288xf32, #tpu.memory_space<vmem>>, vector<8x288xf32>,
    %c0_17 = arith.constant 0 : index
    %c0_18 = arith.constant 0 : index
    %c19 = arith.constant 19 : index
    %14 = vector.load %arg1[%c0_17, %c0_18, %c19] : memref<1x8x342xf32, #tpu.memory_space<vmem>>, vector<1x8x288xf32>
    %15 = vector.shape_cast %14 : vector<1x8x288xf32> to vector<8x288xf32>
    %c32 = arith.constant 32 : index
    %c0_19 = arith.constant 0 : index
    %16 = vector.load %arg5[%c32, %c0_19] : memref<72x288xf32, #tpu.memory_space<vmem>>, vector<8x288xf32>
    tpu.vector_store %arg5[%c32, %c0_19], %15 {strides = array<i32>} : memref<72x288xf32, #tpu.memory_space<vmem>>, vector<8x288xf32>,
    %c0_20 = arith.constant 0 : index
    %c0_21 = arith.constant 0 : index
    %c20 = arith.constant 20 : index
    %17 = vector.load %arg1[%c0_20, %c0_21, %c20] : memref<1x8x342xf32, #tpu.memory_space<vmem>>, vector<1x8x288xf32>
    %18 = vector.shape_cast %17 : vector<1x8x288xf32> to vector<8x288xf32>
    %c40 = arith.constant 40 : index
    %c0_22 = arith.constant 0 : index
    %19 = vector.load %arg5[%c40, %c0_22] : memref<72x288xf32, #tpu.memory_space<vmem>>, vector<8x288xf32>
    tpu.vector_store %arg5[%c40, %c0_22], %18 {strides = array<i32>} : memref<72x288xf32, #tpu.memory_space<vmem>>, vector<8x288xf32>,
    %c0_23 = arith.constant 0 : index
    %c0_24 = arith.constant 0 : index
    %c36 = arith.constant 36 : index
    %20 = vector.load %arg1[%c0_23, %c0_24, %c36] : memref<1x8x342xf32, #tpu.memory_space<vmem>>, vector<1x8x288xf32>
    %21 = vector.shape_cast %20 : vector<1x8x288xf32> to vector<8x288xf32>
    %c48 = arith.constant 48 : index
    %c0_25 = arith.constant 0 : index
    %22 = vector.load %arg5[%c48, %c0_25] : memref<72x288xf32, #tpu.memory_space<vmem>>, vector<8x288xf32>
    tpu.vector_store %arg5[%c48, %c0_25], %21 {strides = array<i32>} : memref<72x288xf32, #tpu.memory_space<vmem>>, vector<8x288xf32>,
    %c0_26 = arith.constant 0 : index
    %c0_27 = arith.constant 0 : index
    %c37 = arith.constant 37 : index
    %23 = vector.load %arg1[%c0_26, %c0_27, %c37] : memref<1x8x342xf32, #tpu.memory_space<vmem>>, vector<1x8x288xf32>
    %24 = vector.shape_cast %23 : vector<1x8x288xf32> to vector<8x288xf32>
    %c56 = arith.constant 56 : index
    %c0_28 = arith.constant 0 : index
    %25 = vector.load %arg5[%c56, %c0_28] : memref<72x288xf32, #tpu.memory_space<vmem>>, vector<8x288xf32>
    tpu.vector_store %arg5[%c56, %c0_28], %24 {strides = array<i32>} : memref<72x288xf32, #tpu.memory_space<vmem>>, vector<8x288xf32>,
    %c0_29 = arith.constant 0 : index
    %c0_30 = arith.constant 0 : index
    %c38 = arith.constant 38 : index
    %26 = vector.load %arg1[%c0_29, %c0_30, %c38] : memref<1x8x342xf32, #tpu.memory_space<vmem>>, vector<1x8x288xf32>
    %27 = vector.shape_cast %26 : vector<1x8x288xf32> to vector<8x288xf32>
    %c64 = arith.constant 64 : index
    %c0_31 = arith.constant 0 : index
    %28 = vector.load %arg5[%c64, %c0_31] : memref<72x288xf32, #tpu.memory_space<vmem>>, vector<8x288xf32>
    tpu.vector_store %arg5[%c64, %c0_31], %27 {strides = array<i32>} : memref<72x288xf32, #tpu.memory_space<vmem>>, vector<8x288xf32>,
    %c0_32 = arith.constant 0 : index
    %c0_33 = arith.constant 0 : index
    %29 = vector.load %arg5[%c0_32, %c0_33] : memref<72x288xf32, #tpu.memory_space<vmem>>, vector<72x288xf32>
    %cst = arith.constant dense<0.000000e+00> : vector<8x288xf32>
    %30 = tpu.matmul %0, %29, %cst {dimension_numbers = #tpu.dot_dimension_numbers<[1], [0], [0], [1], [0, 0, 1, 1], [], []>} : vector<8x72xf32>, vector<72x288xf32>, vector<8x288xf32> -> vector<8x288xf32>
    %31 = vector.broadcast %1 : vector<8x1xf32> to vector<8x288xf32>
    %32 = arith.addf %30, %31 : vector<8x288xf32>
    %33 = math.absf %32 : vector<8x288xf32>
    %cst_34 = arith.constant 0.000000e+00 : f32
    %34 = vector.broadcast %cst_34 : f32 to vector<8x288xf32>
    %35 = arith.subf %34, %33 : vector<8x288xf32>
    %36 = math.exp %35 : vector<8x288xf32>
    %cst_35 = arith.constant 1.000000e+00 : f32
    %37 = vector.broadcast %cst_35 : f32 to vector<8x288xf32>
    %38 = arith.addf %37, %36 : vector<8x288xf32>
    %39 = tpu.reciprocal %38 {approx = true} : vector<8x288xf32> -> vector<8x288xf32>
    %cst_36 = arith.constant 0.000000e+00 : f32
    %40 = vector.broadcast %cst_36 : f32 to vector<8x288xf32>
    %41 = arith.cmpf oge, %32, %40 : vector<8x288xf32>
    %cst_37 = arith.constant 1.000000e+00 : f32
    %42 = vector.broadcast %cst_37 : f32 to vector<8x288xf32>
    %43 = arith.subf %42, %39 : vector<8x288xf32>
    %44 = arith.select %41, %39, %43 : vector<8x288xi1>, vector<8x288xf32>
    %45 = arith.mulf %32, %44 : vector<8x288xf32>
    %c0_38 = arith.constant 0 : index
    %c0_39 = arith.constant 0 : index
    %c0_40 = arith.constant 0 : index
    %46 = vector.load %arg4[%c0_38, %c0_39, %c0_40] : memref<1x8x288xf32, #tpu.memory_space<vmem>>, vector<1x8x288xf32>
    %47 = vector.shape_cast %46 : vector<1x8x288xf32> to vector<8x288xf32>
    %48 = vector.shape_cast %45 : vector<8x288xf32> to vector<1x8x288xf32>
    tpu.vector_store %arg4[%c0_38, %c0_39, %c0_40], %48 {strides = array<i32>} : memref<1x8x288xf32, #tpu.memory_space<vmem>>, vector<1x8x288xf32>,
    return
  }
  func.func @transform_0(%arg0: i32) -> (i32, i32, i32) {
    %c0_i32 = arith.constant 0 : i32
    %c0_i32_0 = arith.constant 0 : i32
    %c0_i32_1 = arith.constant 0 : i32
    return %arg0, %c0_i32, %c0_i32_0 : i32, i32, i32
  }
  func.func @transform_1(%arg0: i32) -> (i32, i32) {
    %c0_i32 = arith.constant 0 : i32
    %c0_i32_0 = arith.constant 0 : i32
    %c0_i32_1 = arith.constant 0 : i32
    return %c0_i32, %c0_i32_0 : i32, i32
  }
  func.func @transform_2(%arg0: i32) -> (i32, i32) {
    %c0_i32 = arith.constant 0 : i32
    %c0_i32_0 = arith.constant 0 : i32
    %c0_i32_1 = arith.constant 0 : i32
    return %c0_i32, %c0_i32_0 : i32, i32
  }
  func.func @transform_3(%arg0: i32) -> (i32, i32, i32) {
    %c0_i32 = arith.constant 0 : i32
    %c0_i32_0 = arith.constant 0 : i32
    %c0_i32_1 = arith.constant 0 : i32
    return %arg0, %c0_i32, %c0_i32_0 : i32, i32, i32
  }
}

</mosaic_0001>

<llo_original>
// kernel: conv_bn_silu.1
$region0: #{conv_bn_silu.1}
  #allocation0 [shape = 'u32[]', space=smem, size = 0x4, offset = 0x4, fixed_abs, tag = 'smem constant byte address 0x4 - core index']
  #allocation1 [shape = 'u32[144,128]{1,0:T(1,128)}', space=vmem, size = 0x12000, scoped, tag = 'internal scratch']
  #allocation2 [shape = 'f32[72,288]{1,0:T(8,128)}', space=vmem, size = 0x1b000, scoped, tag = 'scratch operand']
  %s0 = inlined_call_operand.vmem [shape: f32[2,8,342], index: 0, kind: input, shape index: {}]
  %s1 = inlined_call_operand.vmem [shape: f32[8,72], index: 1, kind: input, shape index: {}]
  %s2 = inlined_call_operand.vmem [shape: f32[8,1], index: 2, kind: input, shape index: {}]
  %s3 = inlined_call_operand.vmem [shape: f32[2,8,288], index: 3, kind: output, shape index: {}]
  %s4 = sld [smem:[#allocation0]]
  $region45: #{conv_bn_silu.1} parent=0
    _
  %s6 = ssub.s32 1, %s4
  %s7 = scalar_select 0, %s6, %s4
  loop: start=0, step=1, limit=4
  $region2: #{conv_bn_silu.1} parent=0 // loop_pre_header
    _
  $region3: #{conv_bn_silu.1} parent=0 // loop_header
    %s9 = sphi 0, %s13
    %p10 = scmp.ge.s32.totalorder %s9, 4
    %s19 = sphi 0, %s21
    %s22 = sphi 0, %s19
    %s23 = sphi 0, %s22
    %s39 = sphi 0, %s23
    %s43 = sphi 0, %s43
    %s45 = sphi 0, %s43
    %s46 = sphi 0, %s45
    %s60 = sphi 0, %s46
    %s64 = sphi 0, %s64
    %s66 = sphi 0, %s64
    %s67 = sphi 0, %s66
    %s81 = sphi 0, %s67
    %s87 = sphi 0, %s89
    %s90 = sphi 0, %s87
    %s91 = sphi 0, %s90
    %s107 = sphi 0, %s91
  $region4: #{conv_bn_silu.1} parent=0 // loop_header_branch
    %12 = sbr.rel (%p10) target = $region8
  $region5: #{conv_bn_silu.1} parent=0 // loop_body
    %s14 = ssub.s32 %s9, 1
    %s15 = ssub.s32 %s9, 2
    %s16 = sadd.s32 %s9, 1
    %s17 = ssub.s32 %s9, %s16
    %p18 = scmp.eq.s32.totalorder %s17, 0
    %s20 = sadd.s32 %s19, 1
    %s21 = scalar_select %p18, %s19, %s20
    %p24 = pneg %p18
    %p25 = scmp.eq.s32.totalorder %s9, 1
    %p26 = por %p24, %p25
    %p27 = scmp.ne.s32.totalorder %s19, %s22
    %p28 = scmp.eq.s32.totalorder %s9, 0
    %p29 = por %p27, %p28
    %p30 = scmp.ne.s32.totalorder %s19, %s22
    %p31 = scmp.eq.s32.totalorder %s14, 1
    %p32 = por %p30, %p31
    %p33 = scmp.ne.s32.totalorder %s22, %s23
    %p34 = scmp.eq.s32.totalorder %s14, 0
    %p35 = por %p33, %p34
    %p36 = scmp.ne.s32.totalorder %s22, %s23
    %p37 = scmp.eq.s32.totalorder %s15, 1
    %p38 = por %p36, %p37
    %p40 = scmp.ne.s32.totalorder %s23, %s39
    %p41 = scmp.eq.s32.totalorder %s15, 0
    %p42 = por %p40, %p41
    %s44 = sadd.s32 %s43, 1
    %p47 = scmp.eq.s32.totalorder %s9, 1
    %p48 = scmp.ne.s32.totalorder %s43, %s45
    %p49 = scmp.eq.s32.totalorder %s9, 0
    %p50 = por %p48, %p49
    %p51 = scmp.ne.s32.totalorder %s43, %s45
    %p52 = scmp.eq.s32.totalorder %s14, 1
    %p53 = por %p51, %p52
    %p54 = scmp.ne.s32.totalorder %s45, %s46
    %p55 = scmp.eq.s32.totalorder %s14, 0
    %p56 = por %p54, %p55
    %p57 = scmp.ne.s32.totalorder %s45, %s46
    %p58 = scmp.eq.s32.totalorder %s15, 1
    %p59 = por %p57, %p58
    %p61 = scmp.ne.s32.totalorder %s46, %s60
    %p62 = scmp.eq.s32.totalorder %s15, 0
    %p63 = por %p61, %p62
    %s65 = sadd.s32 %s64, 1
    %p68 = scmp.eq.s32.totalorder %s9, 1
    %p69 = scmp.ne.s32.totalorder %s64, %s66
    %p70 = scmp.eq.s32.totalorder %s9, 0
    %p71 = por %p69, %p70
    %p72 = scmp.ne.s32.totalorder %s64, %s66
    %p73 = scmp.eq.s32.totalorder %s14, 1
    %p74 = por %p72, %p73
    %p75 = scmp.ne.s32.totalorder %s66, %s67
    %p76 = scmp.eq.s32.totalorder %s14, 0
    %p77 = por %p75, %p76
    %p78 = scmp.ne.s32.totalorder %s66, %s67
    %p79 = scmp.eq.s32.totalorder %s15, 1
    %p80 = por %p78, %p79
    %p82 = scmp.ne.s32.totalorder %s67, %s81
    %p83 = scmp.eq.s32.totalorder %s15, 0
    %p84 = por %p82, %p83
    %s85 = ssub.s32 %s9, %s16
    %p86 = scmp.eq.s32.totalorder %s85, 0
    %s88 = sadd.s32 %s87, 1
    %s89 = scalar_select %p86, %s87, %s88
    %p92 = pneg %p86
    %p93 = scmp.eq.s32.totalorder %s9, 1
    %p94 = por %p92, %p93
    %p95 = scmp.ne.s32.totalorder %s87, %s90
    %p96 = scmp.eq.s32.totalorder %s9, 0
    %p97 = por %p95, %p96
    %p98 = scmp.ne.s32.totalorder %s87, %s90
    %p99 = scmp.eq.s32.totalorder %s14, 1
    %p100 = por %p98, %p99
    %p101 = scmp.ne.s32.totalorder %s90, %s91
    %p102 = scmp.eq.s32.totalorder %s14, 0
    %p103 = por %p101, %p102
    %p104 = scmp.ne.s32.totalorder %s90, %s91
    %p105 = scmp.eq.s32.totalorder %s15, 1
    %p106 = por %p104, %p105
    %p108 = scmp.ne.s32.totalorder %s91, %s107
    %p109 = scmp.eq.s32.totalorder %s15, 0
    %p110 = por %p108, %p109
    %p111 = scmp.le.s32.totalorder 1, %s9
    %p112 = scmp.lt.s32.totalorder %s9, 3
    %p113 = pnand %p111, %p112
    %p114 = pneg %p113
    // Predicated region
    $region9: #{conv_bn_silu.1} parent=5 // pred_check
      _
    $region10: #{conv_bn_silu.1} parent=5 // pred_check_branch
      %116 = sbr.rel (%p113) target = $region12
    $region11: #{conv_bn_silu.1} parent=5 // pred_region
      %s117 = ssub.s32 %s9, 1
      // Predicated region
      $region13: #{conv_bn_silu.1} parent=11 // pred_check
        %p118 = pneg %p56
      $region14: #{conv_bn_silu.1} parent=11 // pred_check_branch
        %120 = sbr.rel (%p118) target = $region16
      $region15: #{conv_bn_silu.1} parent=11 // pred_region
        _
      $region16: #{conv_bn_silu.1} parent=11 // pred_fallthru
        _
      // Predicated region
      $region17: #{conv_bn_silu.1} parent=11 // pred_check
        %p121 = pneg %p77
      $region18: #{conv_bn_silu.1} parent=11 // pred_check_branch
        %123 = sbr.rel (%p121) target = $region20
      $region19: #{conv_bn_silu.1} parent=11 // pred_region
        _
      $region20: #{conv_bn_silu.1} parent=11 // pred_fallthru
        _
    $region12: #{conv_bn_silu.1} parent=5 // pred_fallthru
      _
    %p124 = scmp.lt.s32.totalorder %s9, 2
    // Predicated region
    $region21: #{conv_bn_silu.1} parent=5 // pred_check
      %p125 = pneg %p124
    $region22: #{conv_bn_silu.1} parent=5 // pred_check_branch
      %127 = sbr.rel (%p125) target = $region24
    $region23: #{conv_bn_silu.1} parent=5 // pred_region
      // Predicated region
      $region25: #{conv_bn_silu.1} parent=23 // pred_check
        %p128 = pneg %p29
      $region26: #{conv_bn_silu.1} parent=23 // pred_check_branch
        %130 = sbr.rel (%p128) target = $region28
      $region27: #{conv_bn_silu.1} parent=23 // pred_region
        %p131 = scmp.lt.s32.totalorder %s9, 1
        %s132 = scalar_select %p131, %s9, 1
        %s133 = smul.addr %s132, 3
        %s134 = smul.addr %s133, 8
        %s135 = scalar_lea.vmem %s0, %s134
      $region28: #{conv_bn_silu.1} parent=23 // pred_fallthru
        _
    $region24: #{conv_bn_silu.1} parent=5 // pred_fallthru
      _
    %p136 = scmp.le.s32.totalorder 1, %s9
    %p137 = scmp.lt.s32.totalorder %s9, 3
    %p138 = pnand %p136, %p137
    %p139 = pneg %p138
    // Predicated region
    $region29: #{conv_bn_silu.1} parent=5 // pred_check
      _
    $region30: #{conv_bn_silu.1} parent=5 // pred_check_branch
      %141 = sbr.rel (%p138) target = $region32
    $region31: #{conv_bn_silu.1} parent=5 // pred_region
      %s142 = ssub.s32 %s9, 1
      %p143 = scmp.lt.s32.totalorder %s14, 1
      %s144 = scalar_select %p143, %s14, 1
      %s145 = smul.addr %s144, 3
      %s146 = smul.addr %s145, 8
      %s147 = scalar_lea.vmem %s0, %s146
      %p148 = pneg %p35
      %p149 = pneg %p32
      %p150 = pneg %p56
      %p151 = pneg %p53
      %p152 = pneg %p77
      %p153 = pneg %p74
      %p154 = pneg %p103
      %p155 = pneg %p100
      %p156 = scmp.lt.s32.totalorder %s14, 1
      %s157 = scalar_select %p156, %s14, 1
      %s158 = smul.addr %s157, 3
      %s159 = smul.addr %s158, 8
      %s160 = scalar_lea.vmem %s3, %s159
      %p161 = scmp.lt.s32.totalorder %s14, 1
      %s162 = scalar_select %p161, %s14, 1
      %s163 = smul.addr %s162, 3
      %s164 = smul.addr %s163, 8
      %s165 = scalar_lea.vmem %s0, %s164
      %p166 = scmp.lt.s32.totalorder %s14, 1
      %s167 = scalar_select %p166, %s14, 1
      %s168 = smul.addr %s167, 3
      %s169 = smul.addr %s168, 8
      %s170 = scalar_lea.vmem %s3, %s169
      %v171 = vld [vmem:[%s1] sm:$0xff]
      %v172 = vld [vmem:[%s2] sm:$0xff]
      %v173 = vld [vmem:[%s165] sm:$0xff]
      %v174 = vld [vmem:[%s165 + $0x8] sm:$0xff]
      %v175 = vld [vmem:[%s165 + $0x10] sm:$0xff]
      %176 = vst [vmem:[#allocation2] sm:$0xff] %v173
      %177 = vst [vmem:[#allocation2 + $0x8] sm:$0xff] %v174
      %vm178 = vcmask 261120
      %179 = vst.msk [vmem:[#allocation2 + $0x10] sm:$0xff] %vm178, %v175
      %v180 = vld [vmem:[%s165] sm:$0xff]
      %v181 = vld [vmem:[%s165 + $0x8] sm:$0xff]
      %v182 = vld [vmem:[%s165 + $0x10] sm:$0xff]
      %186 = vrot.lane.b32.xlu0 %v180, 127
      %v187 = vpop.permute.xlu0 %186
      %188 = vrot.lane.b32.xlu0 %v181, 127
      %v189 = vpop.permute.xlu0 %188
      %190 = vrot.lane.b32.xlu0 %v182, 127
      %v191 = vpop.permute.xlu0 %190
      %vm192 = vcmask 1039360
      %v193 = vsel %vm192, %v187, %v189
      %v194 = vsel %vm192, %v189, %v191
      %198 = vst [vmem:[#allocation2 + $0x18] sm:$0xff] %v193
      %199 = vst [vmem:[#allocation2 + $0x20] sm:$0xff] %v194
      %200 = vst.msk [vmem:[#allocation2 + $0x28] sm:$0xff] %vm178, %v191
      %v201 = vld [vmem:[%s165] sm:$0xff]
      %v202 = vld [vmem:[%s165 + $0x8] sm:$0xff]
      %v203 = vld [vmem:[%s165 + $0x10] sm:$0xff]
      %207 = vrot.lane.b32.xlu0 %v201, 126
      %v208 = vpop.permute.xlu0 %207
      %209 = vrot.lane.b32.xlu0 %v202, 126
      %v210 = vpop.permute.xlu0 %209
      %211 = vrot.lane.b32.xlu0 %v203, 126
      %v212 = vpop.permute.xlu0 %211
      %vm213 = vcmask 1031168
      %v214 = vsel %vm213, %v208, %v210
      %v215 = vsel %vm213, %v210, %v212
      %219 = vst [vmem:[#allocation2 + $0x30] sm:$0xff] %v214
      %220 = vst [vmem:[#allocation2 + $0x38] sm:$0xff] %v215
      %221 = vst.msk [vmem:[#allocation2 + $0x40] sm:$0xff] %vm178, %v212
      %v222 = vld [vmem:[%s165] sm:$0xff]
      %v223 = vld [vmem:[%s165 + $0x8] sm:$0xff]
      %v224 = vld [vmem:[%s165 + $0x10] sm:$0xff]
      %228 = vrot.lane.b32.xlu0 %v222, 110
      %v229 = vpop.permute.xlu0 %228
      %230 = vrot.lane.b32.xlu0 %v223, 110
      %v231 = vpop.permute.xlu0 %230
      %232 = vrot.lane.b32.xlu0 %v224, 110
      %v233 = vpop.permute.xlu0 %232
      %vm234 = vcmask 900096
      %v235 = vsel %vm234, %v229, %v231
      %v236 = vsel %vm234, %v231, %v233
      %240 = vst [vmem:[#allocation2 + $0x48] sm:$0xff] %v235
      %241 = vst [vmem:[#allocation2 + $0x50] sm:$0xff] %v236
      %242 = vst.msk [vmem:[#allocation2 + $0x58] sm:$0xff] %vm178, %v233
      %v243 = vld [vmem:[%s165] sm:$0xff]
      %v244 = vld [vmem:[%s165 + $0x8] sm:$0xff]
      %v245 = vld [vmem:[%s165 + $0x10] sm:$0xff]
      %249 = vrot.lane.b32.xlu0 %v243, 109
      %v250 = vpop.permute.xlu0 %249
      %251 = vrot.lane.b32.xlu0 %v244, 109
      %v252 = vpop.permute.xlu0 %251
      %253 = vrot.lane.b32.xlu0 %v245, 109
      %v254 = vpop.permute.xlu0 %253
      %vm255 = vcmask 891904
      %v256 = vsel %vm255, %v250, %v252
      %v257 = vsel %vm255, %v252, %v254
      %261 = vst [vmem:[#allocation2 + $0x60] sm:$0xff] %v256
      %262 = vst [vmem:[#allocation2 + $0x68] sm:$0xff] %v257
      %263 = vst.msk [vmem:[#allocation2 + $0x70] sm:$0xff] %vm178, %v254
      %v264 = vld [vmem:[%s165] sm:$0xff]
      %v265 = vld [vmem:[%s165 + $0x8] sm:$0xff]
      %v266 = vld [vmem:[%s165 + $0x10] sm:$0xff]
      %270 = vrot.lane.b32.xlu0 %v264, 108
      %v271 = vpop.permute.xlu0 %270
      %272 = vrot.lane.b32.xlu0 %v265, 108
      %v273 = vpop.permute.xlu0 %272
      %274 = vrot.lane.b32.xlu0 %v266, 108
      %v275 = vpop.permute.xlu0 %274
      %vm276 = vcmask 883712
      %v277 = vsel %vm276, %v271, %v273
      %v278 = vsel %vm276, %v273, %v275
      %282 = vst [vmem:[#allocation2 + $0x78] sm:$0xff] %v277
      %283 = vst [vmem:[#allocation2 + $0x80] sm:$0xff] %v278
      %284 = vst.msk [vmem:[#allocation2 + $0x88] sm:$0xff] %vm178, %v275
      %v285 = vld [vmem:[%s165] sm:$0xff]
      %v286 = vld [vmem:[%s165 + $0x8] sm:$0xff]
      %v287 = vld [vmem:[%s165 + $0x10] sm:$0xff]
      %291 = vrot.lane.b32.xlu0 %v285, 92
      %v292 = vpop.permute.xlu0 %291
      %293 = vrot.lane.b32.xlu0 %v286, 92
      %v294 = vpop.permute.xlu0 %293
      %295 = vrot.lane.b32.xlu0 %v287, 92
      %v296 = vpop.permute.xlu0 %295
      %vm297 = vcmask 752640
      %v298 = vsel %vm297, %v292, %v294
      %v299 = vsel %vm297, %v294, %v296
      %303 = vst [vmem:[#allocation2 + $0x90] sm:$0xff] %v298
      %304 = vst [vmem:[#allocation2 + $0x98] sm:$0xff] %v299
      %305 = vst.msk [vmem:[#allocation2 + $0xa0] sm:$0xff] %vm178, %v296
      %v306 = vld [vmem:[%s165] sm:$0xff]
      %v307 = vld [vmem:[%s165 + $0x8] sm:$0xff]
      %v308 = vld [vmem:[%s165 + $0x10] sm:$0xff]
      %312 = vrot.lane.b32.xlu0 %v306, 91
      %v313 = vpop.permute.xlu0 %312
      %314 = vrot.lane.b32.xlu0 %v307, 91
      %v315 = vpop.permute.xlu0 %314
      %316 = vrot.lane.b32.xlu0 %v308, 91
      %v317 = vpop.permute.xlu0 %316
      %vm318 = vcmask 744448
      %v319 = vsel %vm318, %v313, %v315
      %v320 = vsel %vm318, %v315, %v317
      %324 = vst [vmem:[#allocation2 + $0xa8] sm:$0xff] %v319
      %325 = vst [vmem:[#allocation2 + $0xb0] sm:$0xff] %v320
      %326 = vst.msk [vmem:[#allocation2 + $0xb8] sm:$0xff] %vm178, %v317
      %v327 = vld [vmem:[%s165] sm:$0xff]
      %v328 = vld [vmem:[%s165 + $0x8] sm:$0xff]
      %v329 = vld [vmem:[%s165 + $0x10] sm:$0xff]
      %333 = vrot.lane.b32.xlu0 %v327, 90
      %v334 = vpop.permute.xlu0 %333
      %335 = vrot.lane.b32.xlu0 %v328, 90
      %v336 = vpop.permute.xlu0 %335
      %337 = vrot.lane.b32.xlu0 %v329, 90
      %v338 = vpop.permute.xlu0 %337
      %vm339 = vcmask 736256
      %v340 = vsel %vm339, %v334, %v336
      %v341 = vsel %vm339, %v336, %v338
      %345 = vst [vmem:[#allocation2 + $0xc0] sm:$0xff] %v340
      %346 = vst [vmem:[#allocation2 + $0xc8] sm:$0xff] %v341
      %347 = vst.msk [vmem:[#allocation2 + $0xd0] sm:$0xff] %vm178, %v338
      %v348 = vld [vmem:[#allocation2] sm:$0xff]
      %v349 = vld [vmem:[#allocation2 + $0x8] sm:$0xff]
      %v350 = vld [vmem:[#allocation2 + $0x10] sm:$0xff]
      %v351 = vld [vmem:[#allocation2 + $0x18] sm:$0xff]
      %v352 = vld [vmem:[#allocation2 + $0x20] sm:$0xff]
      %v353 = vld [vmem:[#allocation2 + $0x28] sm:$0xff]
      %v354 = vld [vmem:[#allocation2 + $0x30] sm:$0xff]
      %v355 = vld [vmem:[#allocation2 + $0x38] sm:$0xff]
      %v356 = vld [vmem:[#allocation2 + $0x40] sm:$0xff]
      %v357 = vld [vmem:[#allocation2 + $0x48] sm:$0xff]
      %v358 = vld [vmem:[#allocation2 + $0x50] sm:$0xff]
      %v359 = vld [vmem:[#allocation2 + $0x58] sm:$0xff]
      %v360 = vld [vmem:[#allocation2 + $0x60] sm:$0xff]
      %v361 = vld [vmem:[#allocation2 + $0x68] sm:$0xff]
      %v362 = vld [vmem:[#allocation2 + $0x70] sm:$0xff]
      %v363 = vld [vmem:[#allocation2 + $0x78] sm:$0xff]
      %v364 = vld [vmem:[#allocation2 + $0x80] sm:$0xff]
      %v365 = vld [vmem:[#allocation2 + $0x88] sm:$0xff]
      %v366 = vld [vmem:[#allocation2 + $0x90] sm:$0xff]
      %v367 = vld [vmem:[#allocation2 + $0x98] sm:$0xff]
      %v368 = vld [vmem:[#allocation2 + $0xa0] sm:$0xff]
      %v369 = vld [vmem:[#allocation2 + $0xa8] sm:$0xff]
      %v370 = vld [vmem:[#allocation2 + $0xb0] sm:$0xff]
      %v371 = vld [vmem:[#allocation2 + $0xb8] sm:$0xff]
      %v372 = vld [vmem:[#allocation2 + $0xc0] sm:$0xff]
      %v373 = vld [vmem:[#allocation2 + $0xc8] sm:$0xff]
      %v374 = vld [vmem:[#allocation2 + $0xd0] sm:$0xff]
      %376 = vset.pattern.permute.xlu0 0
      %377 = vperm.xlu0 %376, %v172
      %v378 = vpop.permute.xlu0 %377
      %vm380 = vcmask 588800
      %v382 = vsel %vm380, %v171, 0
      %384 = vmatprep.subr.mxu0 %v349
      %385 = vmatpush1.msra.mxu0 %v348
      %386 = vmatprep.subr.mxu0 %v352
      %387 = vmatpush1.msra.mxu0 %v351
      %388 = vmatprep.subr.mxu0 %v355
      %389 = vmatpush1.msra.mxu0 %v354
      %390 = vmatprep.subr.mxu0 %v358
      %391 = vmatpush1.msra.mxu0 %v357
      %392 = vmatprep.subr.mxu0 %v361
      %393 = vmatpush1.msra.mxu0 %v360
      %394 = vmatprep.subr.mxu0 %v364
      %395 = vmatpush1.msra.mxu0 %v363
      %396 = vmatprep.subr.mxu0 %v367
      %397 = vmatpush1.msra.mxu0 %v366
      %398 = vmatprep.subr.mxu0 %v370
      %399 = vmatpush1.msra.mxu0 %v369
      %400 = vmatprep.subr.mxu0 %v373
      %401 = vmatpush1.msra.mxu0 %v372
      %402 = vmatprep.subr.mxu0 0.0
      %403 = vmatpush1.msra.mxu0 0.0
      %404 = vmatprep.subr.mxu0 0.0
      %405 = vmatpush1.msra.mxu0 0.0
      %406 = vmatprep.subr.mxu0 0.0
      %407 = vmatpush1.msra.mxu0 0.0
      %408 = vmatprep.subr.mxu0 0.0
      %409 = vmatpush1.msra.mxu0 0.0
      %410 = vmatprep.subr.mxu0 0.0
      %411 = vmatpush1.msra.mxu0 0.0
      %412 = vmatprep.subr.mxu0 0.0
      %413 = vmatpush1.msra.mxu0 0.0
      %414 = vmatprep.subr.mxu0 0.0
      %415 = vmatpush1.msra.mxu0 0.0
      %416 = vmatprep.subr.mxu0 0.0
      %417 = vmatpush1.msra.mxu0 0.0
      %418 = vmatprep.subr.mxu0 0.0
      %419 = vmatpush1.msra.mxu0 0.0
      %420 = vmatprep.subr.mxu0 0.0
      %421 = vmatpush1.msra.mxu0 0.0
      %422 = vmatprep.subr.mxu0 0.0
      %423 = vmatpush1.msra.mxu0 0.0
      %424 = vmatprep.subr.mxu0 0.0
      %425 = vmatpush1.msra.mxu0 0.0
      %426 = vmatprep.subr.mxu0 0.0
      %427 = vmatpush1.msra.mxu0 0.0
      %428 = vmatprep.subr.mxu0 0.0
      %429 = vmatpush1.msra.mxu0 0.0
      %430 = vmatprep.subr.mxu0 0.0
      %431 = vmatpush1.msra.mxu0 0.0
      %432 = vmatprep.subr.mxu0 0.0
      %433 = vmatpush1.msra.mxu0 0.0
      %434 = vmatprep.subr.mxu0 0.0
      %435 = vmatpush1.msra.mxu0 0.0
      %436 = vmatprep.subr.mxu0 0.0
      %437 = vmatpush1.msra.mxu0 0.0
      %438 = vmatprep.subr.mxu0 0.0
      %439 = vmatpush1.msra.mxu0 0.0
      %440 = vmatprep.subr.mxu0 0.0
      %441 = vmatpush1.msra.mxu0 0.0
      %442 = vmatprep.subr.mxu0 0.0
      %443 = vmatpush1.msra.mxu0 0.0
      %444 = vmatprep.subr.mxu0 0.0
      %445 = vmatpush1.msra.mxu0 0.0
      %446 = vmatprep.subr.mxu0 0.0
      %447 = vmatpush1.msra.mxu0 0.0
      %448 = vmatprep.mubr.f32.mxu0 0.0
      %449 = vmatmul.mubr.f32.gmra.mrb[0].mxu0 %v382
      %v450 = vpop.f32.mrb[0].mxu0
      %v451 = vadd.f32 %v378, %v450
      %v452 = vpop.f32.mrb[0].mxu0
      %v453 = vadd.f32 %v378, %v452
      %454 = vdwg.mxu0
      %455 = vmatprep.subr.mxu0 0.0
      %456 = vmatpush1.msra.mxu0 %v350
      %457 = vmatprep.subr.mxu0 0.0
      %458 = vmatpush1.msra.mxu0 %v353
      %459 = vmatprep.subr.mxu0 0.0
      %460 = vmatpush1.msra.mxu0 %v356
      %461 = vmatprep.subr.mxu0 0.0
      %462 = vmatpush1.msra.mxu0 %v359
      %463 = vmatprep.subr.mxu0 0.0
      %464 = vmatpush1.msra.mxu0 %v362
      %465 = vmatprep.subr.mxu0 0.0
      %466 = vmatpush1.msra.mxu0 %v365
      %467 = vmatprep.subr.mxu0 0.0
      %468 = vmatpush1.msra.mxu0 %v368
      %469 = vmatprep.subr.mxu0 0.0
      %470 = vmatpush1.msra.mxu0 %v371
      %471 = vmatprep.subr.mxu0 0.0
      %472 = vmatpush1.msra.mxu0 %v374
      %473 = vmatprep.subr.mxu0 0.0
      %474 = vmatpush1.msra.mxu0 0.0
      %475 = vmatprep.subr.mxu0 0.0
      %476 = vmatpush1.msra.mxu0 0.0
      %477 = vmatprep.subr.mxu0 0.0
      %478 = vmatpush1.msra.mxu0 0.0
      %479 = vmatprep.subr.mxu0 0.0
      %480 = vmatpush1.msra.mxu0 0.0
      %481 = vmatprep.subr.mxu0 0.0
      %482 = vmatpush1.msra.mxu0 0.0
      %483 = vmatprep.subr.mxu0 0.0
      %484 = vmatpush1.msra.mxu0 0.0
      %485 = vmatprep.subr.mxu0 0.0
      %486 = vmatpush1.msra.mxu0 0.0
      %487 = vmatprep.subr.mxu0 0.0
      %488 = vmatpush1.msra.mxu0 0.0
      %489 = vmatprep.subr.mxu0 0.0
      %490 = vmatpush1.msra.mxu0 0.0
      %491 = vmatprep.subr.mxu0 0.0
      %492 = vmatpush1.msra.mxu0 0.0
      %493 = vmatprep.subr.mxu0 0.0
      %494 = vmatpush1.msra.mxu0 0.0
      %495 = vmatprep.subr.mxu0 0.0
      %496 = vmatpush1.msra.mxu0 0.0
      %497 = vmatprep.subr.mxu0 0.0
      %498 = vmatpush1.msra.mxu0 0.0
      %499 = vmatprep.subr.mxu0 0.0
      %500 = vmatpush1.msra.mxu0 0.0
      %501 = vmatprep.subr.mxu0 0.0
      %502 = vmatpush1.msra.mxu0 0.0
      %503 = vmatprep.subr.mxu0 0.0
      %504 = vmatpush1.msra.mxu0 0.0
      %505 = vmatprep.subr.mxu0 0.0
      %506 = vmatpush1.msra.mxu0 0.0
      %507 = vmatprep.subr.mxu0 0.0
      %508 = vmatpush1.msra.mxu0 0.0
      %509 = vmatprep.subr.mxu0 0.0
      %510 = vmatpush1.msra.mxu0 0.0
      %511 = vmatprep.subr.mxu0 0.0
      %512 = vmatpush1.msra.mxu0 0.0
      %513 = vmatprep.subr.mxu0 0.0
      %514 = vmatpush1.msra.mxu0 0.0
      %515 = vmatprep.subr.mxu0 0.0
      %516 = vmatpush1.msra.mxu0 0.0
      %517 = vmatprep.subr.mxu0 0.0
      %518 = vmatpush1.msra.mxu0 0.0
      %519 = vmatprep.mubr.f32.mxu0 0.0
      %520 = vmatmul.mubr.f32.gmra.mrb[0].mxu0 %v382
      %v521 = vpop.f32.mrb[0].mxu0
      %v522 = vadd.f32 %v378, %v521
      %v523 = vpop.f32.mrb[0].mxu0
      %524 = vdwg.mxu0
      %v525 = vand.u32 2147483647, %v451
      %v526 = vand.u32 2147483647, %v453
      %v527 = vand.u32 2147483647, %v522
      %v528 = vsub.f32 0.0, %v525
      %v529 = vsub.f32 0.0, %v526
      %v530 = vsub.f32 0.0, %v527
      %v531 = vmul.f32 %v528, 1.442695
      %v532 = vpow.pop %v531
      %v533 = vmul.f32 %v529, 1.442695
      %v534 = vpow.pop %v533
      %v535 = vmul.f32 %v530, 1.442695
      %v536 = vpow.pop %v535
      %v537 = vadd.f32 %v532, 1.0
      %v538 = vadd.f32 %v534, 1.0
      %v539 = vadd.f32 %v536, 1.0
      %v540 = vrcp.pop %v537
      %v541 = vrcp.pop %v538
      %v542 = vrcp.pop %v539
      %vm543 = vcmp.ge.f32.partialorder %v451, 0.0
      %vm544 = vcmp.ge.f32.partialorder %v453, 0.0
      %vm545 = vcmp.ge.f32.partialorder %v522, 0.0
      %v546 = vsub.f32 1.0, %v540
      %v547 = vsub.f32 1.0, %v541
      %v548 = vsub.f32 1.0, %v542
      %v549 = vsel %vm543, %v540, %v546
      %v550 = vsel %vm544, %v541, %v547
      %v551 = vsel %vm545, %v542, %v548
      %v552 = vmul.f32 %v451, %v549
      %v553 = vmul.f32 %v453, %v550
      %v554 = vmul.f32 %v522, %v551
      %555 = vst [vmem:[%s170] sm:$0xff] %v552
      %556 = vst [vmem:[%s170 + $0x8] sm:$0xff] %v553
      %557 = vst.msk [vmem:[%s170 + $0x10] sm:$0xff] %vm178, %v554
      %p558 = scmp.lt.s32.totalorder %s14, 1
      %s559 = scalar_select %p558, %s14, 1
      %s560 = smul.addr %s559, 3
      %s561 = smul.addr %s560, 8
      %s562 = scalar_lea.vmem %s3, %s561
      // Predicated region
      $region33: #{conv_bn_silu.1} parent=31 // pred_check
        %p563 = pneg %p100
      $region34: #{conv_bn_silu.1} parent=31 // pred_check_branch
        %565 = sbr.rel (%p563) target = $region36
      $region35: #{conv_bn_silu.1} parent=31 // pred_region
        _
      $region36: #{conv_bn_silu.1} parent=31 // pred_fallthru
        _
    $region32: #{conv_bn_silu.1} parent=5 // pred_fallthru
      _
    %p566 = scmp.le.s32.totalorder 2, %s9
    // Predicated region
    $region37: #{conv_bn_silu.1} parent=5 // pred_check
      %p567 = pneg %p566
    $region38: #{conv_bn_silu.1} parent=5 // pred_check_branch
      %569 = sbr.rel (%p567) target = $region40
    $region39: #{conv_bn_silu.1} parent=5 // pred_region
      %s570 = ssub.s32 %s9, 2
      // Predicated region
      $region41: #{conv_bn_silu.1} parent=39 // pred_check
        %p571 = pneg %p106
      $region42: #{conv_bn_silu.1} parent=39 // pred_check_branch
        %573 = sbr.rel (%p571) target = $region44
      $region43: #{conv_bn_silu.1} parent=39 // pred_region
        %p574 = scmp.lt.s32.totalorder %s15, 1
        %s575 = scalar_select %p574, %s15, 1
        %s576 = smul.addr %s575, 3
        %s577 = smul.addr %s576, 8
        %s578 = scalar_lea.vmem %s3, %s577
      $region44: #{conv_bn_silu.1} parent=39 // pred_fallthru
        _
    $region40: #{conv_bn_silu.1} parent=5 // pred_fallthru
      _
  $region6: #{conv_bn_silu.1} parent=0 // loop_footer
    %s13 = sadd.s32 1, %s9
  $region7: #{conv_bn_silu.1} parent=0 // loop_footer_branch
    %8 = sbr.rel target = $region3
  $region8: #{conv_bn_silu.1} parent=0 // loop_exit
    _

</llo_original>
